<compile_context>
chip_gen: v7x
topology: tpu7x:2x2x1
jax: 0.10.0
libtpu: 0.0.40
codegen_flags: <defaults>
</compile_context>

<pallas_src>
import jax
import jax.numpy as jnp
from jax.experimental import pallas as pl
from jax.experimental.pallas import tpu as pltpu

MODEL_DIM = 64      # module default model_dim
FFN_DIM = 512       # module default ffn_dim
LN_EPS = 1e-5       # nn.LayerNorm default eps
TILE_R = 1024       # row tile (fits all of v5e/v6e/v7x scoped-VMEM defaults)


def _round_up(n, m):
    return ((n + m - 1) // m) * m


def ffn_kernel(x_ref, w1_ref, b1_ref, w2_ref, b2_ref, g_ref, beta_ref, out_ref):
    x = x_ref[...]                                   # f32 (tile_r, M): residual + LN input
    xb = x.astype(jnp.bfloat16)

    # First matmul on the MXU (bf16 in, f32 accumulate), bias, ReLU fused with downcast.
    h = jnp.dot(xb, w1_ref[...], preferred_element_type=jnp.float32) + b1_ref[...]
    h = jnp.maximum(h, 0.0).astype(jnp.bfloat16)     # only bf16 copy stays live

    f = jnp.dot(h, w2_ref[...], preferred_element_type=jnp.float32) + b2_ref[...]

    # Dropout: eval-mode identity.
    y = x + f                                        # residual in f32

    # One-pass LayerNorm stats over the last (model_dim) axis, f32 throughout.
    inv_m = jnp.float32(1.0 / MODEL_DIM)
    s = jnp.sum(y, axis=-1, keepdims=True)
    ss = jnp.sum(y * y, axis=-1, keepdims=True)
    mean = s * inv_m
    var = ss * inv_m - mean * mean
    out_ref[...] = (y - mean) * jax.lax.rsqrt(var + LN_EPS) * g_ref[...] + beta_ref[...]


def positional_wise_ffn(x, params):
    """x: (..., MODEL_DIM) float32. Applies the FFN block row-wise."""
    *lead, M = x.shape
    rows = 1
    for d in lead:
        rows *= d
    x2d = x.reshape(rows, M).astype(jnp.float32)

    # Tile sizing: small problems use one sublane-aligned tile; large ones use TILE_R.
    tile_r = min(TILE_R, _round_up(rows, 8))
    rows_p = _round_up(rows, tile_r)
    if rows_p != rows:
        x2d = jnp.pad(x2d, ((0, rows_p - rows), (0, 0)))
    grid = (rows_p // tile_r,)

    row_spec = pl.BlockSpec((tile_r, M), lambda i: (i, 0))
    const = lambda shape: pl.BlockSpec(shape, lambda i: (0, 0))   # resident across grid

    cost = pl.CostEstimate(
        flops=4 * rows_p * MODEL_DIM * FFN_DIM,
        transcendentals=rows_p,
        bytes_accessed=rows_p * MODEL_DIM * 4 * 2
        + MODEL_DIM * FFN_DIM * 2 * 2
        + (FFN_DIM + 3 * MODEL_DIM) * 4,
    )

    out2d = pl.pallas_call(
        ffn_kernel,
        out_shape=jax.ShapeDtypeStruct((rows_p, M), jnp.float32),
        grid=grid,
        in_specs=[
            row_spec,                          # x tile
            const((MODEL_DIM, FFN_DIM)),       # w1 (bf16)
            const((1, FFN_DIM)),               # b1
            const((FFN_DIM, MODEL_DIM)),       # w2 (bf16)
            const((1, MODEL_DIM)),             # b2
            const((1, MODEL_DIM)),             # ln gamma
            const((1, MODEL_DIM)),             # ln beta
        ],
        out_specs=row_spec,
        compiler_params=pltpu.CompilerParams(dimension_semantics=("parallel",)),
        cost_estimate=cost,
    )(
        x2d,
        params["w1_bf16"],
        params["b1"],
        params["w2_bf16"],
        params["b2"],
        params["ln_g"],
        params["ln_b"],
    )

    if rows_p != rows:
        out2d = out2d[:rows]
    return out2d.reshape(*lead, M)


def reference(x, p):
    """Pure-JAX, f32 HIGHEST-precision replica of the PyTorch forward (eval mode)."""
    hi = jax.lax.Precision.HIGHEST
    h = jax.nn.relu(jnp.dot(x, p["w1"], precision=hi) + p["b1"])
    f = jnp.dot(h, p["w2"], precision=hi) + p["b2"]
    y = x + f
    mean = jnp.mean(y, axis=-1, keepdims=True)
    var = jnp.mean((y - mean) ** 2, axis=-1, keepdims=True)
    return (y - mean) * jax.lax.rsqrt(var + LN_EPS) * p["ln_g"] + p["ln_b"]


def make_params(key):
    k1, k2 = jax.random.split(key)
    # Matches _initialize_weights: Linear weights ~ N(0, 0.01), biases = 0,
    # LayerNorm default init (gamma=1, beta=0).
    w1 = (0.01 * jax.random.normal(k1, (MODEL_DIM, FFN_DIM))).astype(jnp.float32)
    w2 = (0.01 * jax.random.normal(k2, (FFN_DIM, MODEL_DIM))).astype(jnp.float32)
    return {
        "w1": w1,
        "w2": w2,
        "w1_bf16": w1.astype(jnp.bfloat16),   # pre-cast once; kernel consumes these
        "w2_bf16": w2.astype(jnp.bfloat16),
        "b1": jnp.zeros((1, FFN_DIM), jnp.float32),
        "b2": jnp.zeros((1, MODEL_DIM), jnp.float32),
        "ln_g": jnp.ones((1, MODEL_DIM), jnp.float32),
        "ln_b": jnp.zeros((1, MODEL_DIM), jnp.float32),
    }


if __name__ == "__main__":
    key = jax.random.PRNGKey(0)
    kx, kp = jax.random.split(key)

    BATCH, SEQ = 2, 8
    x = jax.random.normal(kx, (BATCH, SEQ, MODEL_DIM), dtype=jnp.float32)
    params = make_params(kp)

    out = jax.jit(positional_wise_ffn)(x, params)
    out = jax.block_until_ready(out)

    ref = reference(x, params)
    assert out.shape == x.shape
    max_err = float(jnp.max(jnp.abs(out - ref)))
    assert jnp.allclose(out, ref, atol=1e-2, rtol=1e-2), f"max abs err {max_err}"

    print("KERNEL_OK")
</pallas_src>

<mosaic_0001>
module attributes {stable_mosaic.version = 11 : i64} {
  func.func @ffn_kernel(%arg0: i32, %arg1: memref<16x64xf32, #tpu.memory_space<vmem>>, %arg2: memref<64x512xbf16, #tpu.memory_space<vmem>>, %arg3: memref<1x512xf32, #tpu.memory_space<vmem>>, %arg4: memref<512x64xbf16, #tpu.memory_space<vmem>>, %arg5: memref<1x64xf32, #tpu.memory_space<vmem>>, %arg6: memref<1x64xf32, #tpu.memory_space<vmem>>, %arg7: memref<1x64xf32, #tpu.memory_space<vmem>>, %arg8: memref<16x64xf32, #tpu.memory_space<vmem>>) attributes {dimension_semantics = [#tpu.dimension_semantics<parallel>], iteration_bounds = array<i64: 1>, scalar_prefetch = 0 : i64, scratch_operands = 0 : i64, tpu.core_type = #tpu.core_type<tc>, window_params = [{transform_indices = @transform_0, window_bounds = array<i64: 16, 64>}, {pipeline_mode = #tpu.pipeline_mode<synchronous>, transform_indices = @transform_1, window_bounds = array<i64: 64, 512>}, {pipeline_mode = #tpu.pipeline_mode<synchronous>, transform_indices = @transform_2, window_bounds = array<i64: 1, 512>}, {pipeline_mode = #tpu.pipeline_mode<synchronous>, transform_indices = @transform_3, window_bounds = array<i64: 512, 64>}, {pipeline_mode = #tpu.pipeline_mode<synchronous>, transform_indices = @transform_4, window_bounds = array<i64: 1, 64>}, {pipeline_mode = #tpu.pipeline_mode<synchronous>, transform_indices = @transform_5, window_bounds = array<i64: 1, 64>}, {pipeline_mode = #tpu.pipeline_mode<synchronous>, transform_indices = @transform_6, window_bounds = array<i64: 1, 64>}, {transform_indices = @transform_7, window_bounds = array<i64: 16, 64>}]} {
    %c0 = arith.constant 0 : index
    %c0_0 = arith.constant 0 : index
    %0 = vector.load %arg1[%c0, %c0_0] : memref<16x64xf32, #tpu.memory_space<vmem>>, vector<16x64xf32>
    %1 = arith.truncf %0 : vector<16x64xf32> to vector<16x64xbf16>
    %c0_1 = arith.constant 0 : index
    %c0_2 = arith.constant 0 : index
    %2 = vector.load %arg2[%c0_1, %c0_2] : memref<64x512xbf16, #tpu.memory_space<vmem>>, vector<64x512xbf16>
    %cst = arith.constant dense<0.000000e+00> : vector<16x512xf32>
    %3 = tpu.matmul %1, %2, %cst {dimension_numbers = #tpu.dot_dimension_numbers<[1], [0], [0], [1], [0, 0, 1, 1], [], []>} : vector<16x64xbf16>, vector<64x512xbf16>, vector<16x512xf32> -> vector<16x512xf32>
    %c0_3 = arith.constant 0 : index
    %c0_4 = arith.constant 0 : index
    %4 = vector.load %arg3[%c0_3, %c0_4] : memref<1x512xf32, #tpu.memory_space<vmem>>, vector<1x512xf32>
    %5 = vector.broadcast %4 : vector<1x512xf32> to vector<16x512xf32>
    %6 = arith.addf %3, %5 : vector<16x512xf32>
    %cst_5 = arith.constant 0.000000e+00 : f32
    %7 = vector.broadcast %cst_5 : f32 to vector<16x512xf32>
    %8 = arith.maximumf %6, %7 : vector<16x512xf32>
    %9 = arith.truncf %8 : vector<16x512xf32> to vector<16x512xbf16>
    %c0_6 = arith.constant 0 : index
    %c0_7 = arith.constant 0 : index
    %10 = vector.load %arg4[%c0_6, %c0_7] : memref<512x64xbf16, #tpu.memory_space<vmem>>, vector<512x64xbf16>
    %cst_8 = arith.constant dense<0.000000e+00> : vector<16x64xf32>
    %11 = tpu.matmul %9, %10, %cst_8 {dimension_numbers = #tpu.dot_dimension_numbers<[1], [0], [0], [1], [0, 0, 1, 1], [], []>} : vector<16x512xbf16>, vector<512x64xbf16>, vector<16x64xf32> -> vector<16x64xf32>
    %c0_9 = arith.constant 0 : index
    %c0_10 = arith.constant 0 : index
    %12 = vector.load %arg5[%c0_9, %c0_10] : memref<1x64xf32, #tpu.memory_space<vmem>>, vector<1x64xf32>
    %13 = vector.broadcast %12 : vector<1x64xf32> to vector<16x64xf32>
    %14 = arith.addf %11, %13 : vector<16x64xf32>
    %15 = arith.addf %0, %14 : vector<16x64xf32>
    %cst_11 = arith.constant dense<0.000000e+00> : vector<16xf32>
    %16 = vector.multi_reduction <add>, %15, %cst_11 [1] : vector<16x64xf32> to vector<16xf32>
    %17 = vector.shape_cast %16 : vector<16xf32> to vector<16x1xf32>
    %18 = arith.mulf %15, %15 : vector<16x64xf32>
    %cst_12 = arith.constant dense<0.000000e+00> : vector<16xf32>
    %19 = vector.multi_reduction <add>, %18, %cst_12 [1] : vector<16x64xf32> to vector<16xf32>
    %20 = vector.shape_cast %19 : vector<16xf32> to vector<16x1xf32>
    %cst_13 = arith.constant 1.562500e-02 : f32
    %21 = vector.broadcast %cst_13 : f32 to vector<16x1xf32>
    %22 = arith.mulf %17, %21 : vector<16x1xf32>
    %cst_14 = arith.constant 1.562500e-02 : f32
    %23 = vector.broadcast %cst_14 : f32 to vector<16x1xf32>
    %24 = arith.mulf %20, %23 : vector<16x1xf32>
    %25 = arith.mulf %22, %22 : vector<16x1xf32>
    %26 = arith.subf %24, %25 : vector<16x1xf32>
    %27 = vector.broadcast %22 : vector<16x1xf32> to vector<16x64xf32>
    %28 = arith.subf %15, %27 : vector<16x64xf32>
    %cst_15 = arith.constant 9.99999974E-6 : f32
    %29 = vector.broadcast %cst_15 : f32 to vector<16x1xf32>
    %30 = arith.addf %26, %29 : vector<16x1xf32>
    %31 = math.rsqrt %30 : vector<16x1xf32>
    %32 = vector.broadcast %31 : vector<16x1xf32> to vector<16x64xf32>
    %33 = arith.mulf %28, %32 : vector<16x64xf32>
    %c0_16 = arith.constant 0 : index
    %c0_17 = arith.constant 0 : index
    %34 = vector.load %arg6[%c0_16, %c0_17] : memref<1x64xf32, #tpu.memory_space<vmem>>, vector<1x64xf32>
    %35 = vector.broadcast %34 : vector<1x64xf32> to vector<16x64xf32>
    %36 = arith.mulf %33, %35 : vector<16x64xf32>
    %c0_18 = arith.constant 0 : index
    %c0_19 = arith.constant 0 : index
    %37 = vector.load %arg7[%c0_18, %c0_19] : memref<1x64xf32, #tpu.memory_space<vmem>>, vector<1x64xf32>
    %38 = vector.broadcast %37 : vector<1x64xf32> to vector<16x64xf32>
    %39 = arith.addf %36, %38 : vector<16x64xf32>
    %c0_20 = arith.constant 0 : index
    %c0_21 = arith.constant 0 : index
    %40 = vector.load %arg8[%c0_20, %c0_21] : memref<16x64xf32, #tpu.memory_space<vmem>>, vector<16x64xf32>
    tpu.vector_store %arg8[%c0_20, %c0_21], %39 {strides = array<i32>} : memref<16x64xf32, #tpu.memory_space<vmem>>, vector<16x64xf32>,
    return
  }
  func.func @transform_0(%arg0: i32) -> (i32, i32) {
    %c0_i32 = arith.constant 0 : i32
    %c0_i32_0 = arith.constant 0 : i32
    return %arg0, %c0_i32 : i32, i32
  }
  func.func @transform_1(%arg0: i32) -> (i32, i32) {
    %c0_i32 = arith.constant 0 : i32
    %c0_i32_0 = arith.constant 0 : i32
    %c0_i32_1 = arith.constant 0 : i32
    return %c0_i32, %c0_i32_0 : i32, i32
  }
  func.func @transform_2(%arg0: i32) -> (i32, i32) {
    %c0_i32 = arith.constant 0 : i32
    %c0_i32_0 = arith.constant 0 : i32
    %c0_i32_1 = arith.constant 0 : i32
    return %c0_i32, %c0_i32_0 : i32, i32
  }
  func.func @transform_3(%arg0: i32) -> (i32, i32) {
    %c0_i32 = arith.constant 0 : i32
    %c0_i32_0 = arith.constant 0 : i32
    %c0_i32_1 = arith.constant 0 : i32
    return %c0_i32, %c0_i32_0 : i32, i32
  }
  func.func @transform_4(%arg0: i32) -> (i32, i32) {
    %c0_i32 = arith.constant 0 : i32
    %c0_i32_0 = arith.constant 0 : i32
    %c0_i32_1 = arith.constant 0 : i32
    return %c0_i32, %c0_i32_0 : i32, i32
  }
  func.func @transform_5(%arg0: i32) -> (i32, i32) {
    %c0_i32 = arith.constant 0 : i32
    %c0_i32_0 = arith.constant 0 : i32
    %c0_i32_1 = arith.constant 0 : i32
    return %c0_i32, %c0_i32_0 : i32, i32
  }
  func.func @transform_6(%arg0: i32) -> (i32, i32) {
    %c0_i32 = arith.constant 0 : i32
    %c0_i32_0 = arith.constant 0 : i32
    %c0_i32_1 = arith.constant 0 : i32
    return %c0_i32, %c0_i32_0 : i32, i32
  }
  func.func @transform_7(%arg0: i32) -> (i32, i32) {
    %c0_i32 = arith.constant 0 : i32
    %c0_i32_0 = arith.constant 0 : i32
    return %arg0, %c0_i32 : i32, i32
  }
}

</mosaic_0001>

<llo_original>
// kernel: positional_wise_ffn.1
$region0: #{positional_wise_ffn.1}
  #allocation0 [shape = 'u32[]', space=smem, size = 0x4, offset = 0x4, fixed_abs, tag = 'smem constant byte address 0x4 - core index']
  #allocation1 [shape = 'u32[144,128]{1,0:T(1,128)}', space=vmem, size = 0x12000, scoped, tag = 'internal scratch']
  %s0 = inlined_call_operand.vmem [shape: f32[16,64], index: 0, kind: input, shape index: {}]
  %s1 = inlined_call_operand.vmem [shape: bf16[64,512], index: 1, kind: input, shape index: {}]
  %s2 = inlined_call_operand.vmem [shape: f32[1,512], index: 2, kind: input, shape index: {}]
  %s3 = inlined_call_operand.vmem [shape: bf16[512,64], index: 3, kind: input, shape index: {}]
  %s4 = inlined_call_operand.vmem [shape: f32[1,64], index: 4, kind: input, shape index: {}]
  %s5 = inlined_call_operand.vmem [shape: f32[1,64], index: 5, kind: input, shape index: {}]
  %s6 = inlined_call_operand.vmem [shape: f32[1,64], index: 6, kind: input, shape index: {}]
  %s7 = inlined_call_operand.hbm [shape: f32[16,64], index: 7, kind: output, shape index: {}]
  %s8 = sld [smem:[#allocation0]]
  $region38: #{positional_wise_ffn.1} parent=0
    _
  %s10 = ssub.s32 1, %s8
  %s11 = scalar_select 0, %s10, %s8
  $region1: #{positional_wise_ffn.1} parent=0
    #allocation2 [shape = 'u8[8192]{0}', space=vmem, size = 0x2000, scoped, tag = 'output window, operand 0, single buffered']
    #allocation3 [shape = 's32[1]{0}', space=sflag, size = 0x4, scoped, tag = 'scoped memory for positional_wise_ffn.1']
    %12 = vsyncpa [#allocation3], 0
    // Predicated region
    $region2: #{positional_wise_ffn.1} parent=1 // pred_check
      _
    $region3: #{positional_wise_ffn.1} parent=1 // pred_check_branch
      %14 = sbr.rel (0) target = $region5
    $region4: #{positional_wise_ffn.1} parent=1 // pred_region
      _
    $region5: #{positional_wise_ffn.1} parent=1 // pred_fallthru
      _
    // Predicated region
    $region6: #{positional_wise_ffn.1} parent=1 // pred_check
      _
    $region7: #{positional_wise_ffn.1} parent=1 // pred_check_branch
      %16 = sbr.rel (0) target = $region9
    $region8: #{positional_wise_ffn.1} parent=1 // pred_region
      _
    $region9: #{positional_wise_ffn.1} parent=1 // pred_fallthru
      _
    // Predicated region
    $region10: #{positional_wise_ffn.1} parent=1 // pred_check
      _
    $region11: #{positional_wise_ffn.1} parent=1 // pred_check_branch
      %18 = sbr.rel (0) target = $region13
    $region12: #{positional_wise_ffn.1} parent=1 // pred_region
      _
    $region13: #{positional_wise_ffn.1} parent=1 // pred_fallthru
      _
    // Predicated region
    $region14: #{positional_wise_ffn.1} parent=1 // pred_check
      _
    $region15: #{positional_wise_ffn.1} parent=1 // pred_check_branch
      %20 = sbr.rel (0) target = $region17
    $region16: #{positional_wise_ffn.1} parent=1 // pred_region
      _
    $region17: #{positional_wise_ffn.1} parent=1 // pred_fallthru
      _
    // Predicated region
    $region18: #{positional_wise_ffn.1} parent=1 // pred_check
      _
    $region19: #{positional_wise_ffn.1} parent=1 // pred_check_branch
      %22 = sbr.rel (0) target = $region21
    $region20: #{positional_wise_ffn.1} parent=1 // pred_region
      _
    $region21: #{positional_wise_ffn.1} parent=1 // pred_fallthru
      _
    // Predicated region
    $region22: #{positional_wise_ffn.1} parent=1 // pred_check
      _
    $region23: #{positional_wise_ffn.1} parent=1 // pred_check_branch
      %24 = sbr.rel (0) target = $region25
    $region24: #{positional_wise_ffn.1} parent=1 // pred_region
      _
    $region25: #{positional_wise_ffn.1} parent=1 // pred_fallthru
      _
    // Predicated region
    $region26: #{positional_wise_ffn.1} parent=1 // pred_check
      _
    $region27: #{positional_wise_ffn.1} parent=1 // pred_check_branch
      %26 = sbr.rel (0) target = $region29
    $region28: #{positional_wise_ffn.1} parent=1 // pred_region
      _
    $region29: #{positional_wise_ffn.1} parent=1 // pred_fallthru
      _
    %v28 = vld [vmem:[%s0] sm:$0xff]
    %v29 = vld [vmem:[%s0 + $0x8] sm:$0xff]
    %v30 = vpack.c.bf16 %v29, %v28
    %v31 = vld [vmem:[%s1] sm:$0xff]
    %v32 = vld [vmem:[%s1 + $0x8] sm:$0xff]
    %v33 = vld [vmem:[%s1 + $0x10] sm:$0xff]
    %v34 = vld [vmem:[%s1 + $0x18] sm:$0xff]
    %v35 = vld [vmem:[%s1 + $0x20] sm:$0xff]
    %v36 = vld [vmem:[%s1 + $0x28] sm:$0xff]
    %v37 = vld [vmem:[%s1 + $0x30] sm:$0xff]
    %v38 = vld [vmem:[%s1 + $0x38] sm:$0xff]
    %v39 = vld [vmem:[%s1 + $0x40] sm:$0xff]
    %v40 = vld [vmem:[%s1 + $0x48] sm:$0xff]
    %v41 = vld [vmem:[%s1 + $0x50] sm:$0xff]
    %v42 = vld [vmem:[%s1 + $0x58] sm:$0xff]
    %v43 = vld [vmem:[%s1 + $0x60] sm:$0xff]
    %v44 = vld [vmem:[%s1 + $0x68] sm:$0xff]
    %v45 = vld [vmem:[%s1 + $0x70] sm:$0xff]
    %v46 = vld [vmem:[%s1 + $0x78] sm:$0xff]
    %v47 = vld [vmem:[%s2] sm:$0xf]
    %v49 = vlaneseq
    %v50 = vshrl.u32 %v49, 7
    %v51 = vsub.s32 0, %v50
    %v52 = vrot.slane %v47, %v51
    %v53 = vlaneseq
    %v54 = vshrl.u32 %v53, 7
    %v55 = vsub.s32 1, %v54
    %v56 = vrot.slane %v47, %v55
    %v57 = vlaneseq
    %v58 = vshrl.u32 %v57, 7
    %v59 = vsub.s32 2, %v58
    %v60 = vrot.slane %v47, %v59
    %v61 = vlaneseq
    %v62 = vshrl.u32 %v61, 7
    %v63 = vsub.s32 3, %v62
    %v64 = vrot.slane %v47, %v63
    %v85 = vunpack.c.l.b16 %v31
    %v86 = vunpack.c.h.b16 %v31
    %v87 = vunpack.c.l.b16 %v32
    %v88 = vunpack.c.h.b16 %v32
    %v89 = vunpack.c.l.b16 %v33
    %v90 = vunpack.c.h.b16 %v33
    %v91 = vunpack.c.l.b16 %v34
    %v92 = vunpack.c.h.b16 %v34
    %v93 = vunpack.c.l.b16 %v35
    %v94 = vunpack.c.h.b16 %v35
    %v95 = vunpack.c.l.b16 %v36
    %v96 = vunpack.c.h.b16 %v36
    %v97 = vunpack.c.l.b16 %v37
    %v98 = vunpack.c.h.b16 %v37
    %v99 = vunpack.c.l.b16 %v38
    %v100 = vunpack.c.h.b16 %v38
    %v101 = vunpack.c.l.b16 %v39
    %v102 = vunpack.c.h.b16 %v39
    %v103 = vunpack.c.l.b16 %v40
    %v104 = vunpack.c.h.b16 %v40
    %v105 = vunpack.c.l.b16 %v41
    %v106 = vunpack.c.h.b16 %v41
    %v107 = vunpack.c.l.b16 %v42
    %v108 = vunpack.c.h.b16 %v42
    %v109 = vunpack.c.l.b16 %v43
    %v110 = vunpack.c.h.b16 %v43
    %v111 = vunpack.c.l.b16 %v44
    %v112 = vunpack.c.h.b16 %v44
    %v113 = vunpack.c.l.b16 %v45
    %v114 = vunpack.c.h.b16 %v45
    %v115 = vunpack.c.l.b16 %v46
    %v116 = vunpack.c.h.b16 %v46
    %v117 = vpack.c.b16 %v89, %v85
    %v118 = vpack.c.b16 %v90, %v86
    %v119 = vpack.c.b16 %v91, %v87
    %v120 = vpack.c.b16 %v92, %v88
    %v121 = vpack.c.b16 %v97, %v93
    %v122 = vpack.c.b16 %v98, %v94
    %v123 = vpack.c.b16 %v99, %v95
    %v124 = vpack.c.b16 %v100, %v96
    %v125 = vpack.c.b16 %v105, %v101
    %v126 = vpack.c.b16 %v106, %v102
    %v127 = vpack.c.b16 %v107, %v103
    %v128 = vpack.c.b16 %v108, %v104
    %v129 = vpack.c.b16 %v113, %v109
    %v130 = vpack.c.b16 %v114, %v110
    %v131 = vpack.c.b16 %v115, %v111
    %v132 = vpack.c.b16 %v116, %v112
    %vm149 = vcmask 523264
    %v151 = vsel %vm149, %v30, 0
    %153 = vmatprep.subr.bf16.mxu0 %v118
    %154 = vmatpush1.bf16.msra.mxu0 %v117
    %155 = vmatprep.subr.bf16.mxu0 %v122
    %156 = vmatpush1.bf16.msra.mxu0 %v121
    %157 = vmatprep.subr.bf16.mxu0 %v126
    %158 = vmatpush1.bf16.msra.mxu0 %v125
    %159 = vmatprep.subr.bf16.mxu0 %v130
    %160 = vmatpush1.bf16.msra.mxu0 %v129
    %161 = vmatprep.subr.bf16.mxu0 0
    %162 = vmatpush1.bf16.msra.mxu0 0
    %163 = vmatprep.subr.bf16.mxu0 0
    %164 = vmatpush1.bf16.msra.mxu0 0
    %165 = vmatprep.subr.bf16.mxu0 0
    %166 = vmatpush1.bf16.msra.mxu0 0
    %167 = vmatprep.subr.bf16.mxu0 0
    %168 = vmatpush1.bf16.msra.mxu0 0
    %169 = vmatprep.subr.bf16.mxu0 0
    %170 = vmatpush1.bf16.msra.mxu0 0
    %171 = vmatprep.subr.bf16.mxu0 0
    %172 = vmatpush1.bf16.msra.mxu0 0
    %173 = vmatprep.subr.bf16.mxu0 0
    %174 = vmatpush1.bf16.msra.mxu0 0
    %175 = vmatprep.subr.bf16.mxu0 0
    %176 = vmatpush1.bf16.msra.mxu0 0
    %177 = vmatprep.subr.bf16.mxu0 0
    %178 = vmatpush1.bf16.msra.mxu0 0
    %179 = vmatprep.subr.bf16.mxu0 0
    %180 = vmatpush1.bf16.msra.mxu0 0
    %181 = vmatprep.subr.bf16.mxu0 0
    %182 = vmatpush1.bf16.msra.mxu0 0
    %183 = vmatprep.subr.bf16.mxu0 0
    %184 = vmatpush1.bf16.msra.mxu0 0
    %185 = vmatprep.mubr.bf16.mxu0 0
    %186 = vmatmul.mubr.bf16.gmra.mrb[0].mxu0 %v151
    %v187 = vpop.f32.mrb[0].mxu0
    %v188 = vadd.f32 %v52, %v187
    %v189 = vpop.f32.mrb[0].mxu0
    %v190 = vadd.f32 %v56, %v189
    %v191 = vpop.f32.mrb[0].mxu0
    %v192 = vadd.f32 %v52, %v191
    %v193 = vpop.f32.mrb[0].mxu0
    %v194 = vadd.f32 %v56, %v193
    %195 = vdwg.mxu0
    %196 = vmatprep.subr.bf16.mxu0 %v120
    %197 = vmatpush1.bf16.msra.mxu0 %v119
    %198 = vmatprep.subr.bf16.mxu0 %v124
    %199 = vmatpush1.bf16.msra.mxu0 %v123
    %200 = vmatprep.subr.bf16.mxu0 %v128
    %201 = vmatpush1.bf16.msra.mxu0 %v127
    %202 = vmatprep.subr.bf16.mxu0 %v132
    %203 = vmatpush1.bf16.msra.mxu0 %v131
    %204 = vmatprep.subr.bf16.mxu0 0
    %205 = vmatpush1.bf16.msra.mxu0 0
    %206 = vmatprep.subr.bf16.mxu0 0
    %207 = vmatpush1.bf16.msra.mxu0 0
    %208 = vmatprep.subr.bf16.mxu0 0
    %209 = vmatpush1.bf16.msra.mxu0 0
    %210 = vmatprep.subr.bf16.mxu0 0
    %211 = vmatpush1.bf16.msra.mxu0 0
    %212 = vmatprep.subr.bf16.mxu0 0
    %213 = vmatpush1.bf16.msra.mxu0 0
    %214 = vmatprep.subr.bf16.mxu0 0
    %215 = vmatpush1.bf16.msra.mxu0 0
    %216 = vmatprep.subr.bf16.mxu0 0
    %217 = vmatpush1.bf16.msra.mxu0 0
    %218 = vmatprep.subr.bf16.mxu0 0
    %219 = vmatpush1.bf16.msra.mxu0 0
    %220 = vmatprep.subr.bf16.mxu0 0
    %221 = vmatpush1.bf16.msra.mxu0 0
    %222 = vmatprep.subr.bf16.mxu0 0
    %223 = vmatpush1.bf16.msra.mxu0 0
    %224 = vmatprep.subr.bf16.mxu0 0
    %225 = vmatpush1.bf16.msra.mxu0 0
    %226 = vmatprep.subr.bf16.mxu0 0
    %227 = vmatpush1.bf16.msra.mxu0 0
    %228 = vmatprep.mubr.bf16.mxu0 0
    %229 = vmatmul.mubr.bf16.gmra.mrb[0].mxu0 %v151
    %v230 = vpop.f32.mrb[0].mxu0
    %v231 = vadd.f32 %v60, %v230
    %v232 = vpop.f32.mrb[0].mxu0
    %v233 = vadd.f32 %v64, %v232
    %v234 = vpop.f32.mrb[0].mxu0
    %v235 = vadd.f32 %v60, %v234
    %v236 = vpop.f32.mrb[0].mxu0
    %v237 = vadd.f32 %v64, %v236
    %238 = vdwg.mxu0
    %v239 = vmax.f32 %v188, 0.0
    %v240 = vmax.f32 %v190, 0.0
    %v241 = vmax.f32 %v231, 0.0
    %v242 = vmax.f32 %v233, 0.0
    %v243 = vmax.f32 %v192, 0.0
    %v244 = vmax.f32 %v194, 0.0
    %v245 = vmax.f32 %v235, 0.0
    %v246 = vmax.f32 %v237, 0.0
    %v247 = vpack.c.bf16 %v243, %v239
    %v248 = vpack.c.bf16 %v244, %v240
    %v249 = vpack.c.bf16 %v245, %v241
    %v250 = vpack.c.bf16 %v246, %v242
    %v251 = vld [vmem:[%s3] sm:$0xf]
    %v252 = vld [vmem:[%s3 + $0x4] sm:$0xf]
    %v253 = vld [vmem:[%s3 + $0x8] sm:$0xf]
    %v254 = vld [vmem:[%s3 + $0xc] sm:$0xf]
    %v255 = vld [vmem:[%s3 + $0x10] sm:$0xf]
    %v256 = vld [vmem:[%s3 + $0x14] sm:$0xf]
    %v257 = vld [vmem:[%s3 + $0x18] sm:$0xf]
    %v258 = vld [vmem:[%s3 + $0x1c] sm:$0xf]
    %v259 = vld [vmem:[%s3 + $0x20] sm:$0xf]
    %v260 = vld [vmem:[%s3 + $0x24] sm:$0xf]
    %v261 = vld [vmem:[%s3 + $0x28] sm:$0xf]
    %v262 = vld [vmem:[%s3 + $0x2c] sm:$0xf]
    %v263 = vld [vmem:[%s3 + $0x30] sm:$0xf]
    %v264 = vld [vmem:[%s3 + $0x34] sm:$0xf]
    %v265 = vld [vmem:[%s3 + $0x38] sm:$0xf]
    %v266 = vld [vmem:[%s3 + $0x3c] sm:$0xf]
    %v267 = vld [vmem:[%s3 + $0x40] sm:$0xf]
    %v268 = vld [vmem:[%s3 + $0x44] sm:$0xf]
    %v269 = vld [vmem:[%s3 + $0x48] sm:$0xf]
    %v270 = vld [vmem:[%s3 + $0x4c] sm:$0xf]
    %v271 = vld [vmem:[%s3 + $0x50] sm:$0xf]
    %v272 = vld [vmem:[%s3 + $0x54] sm:$0xf]
    %v273 = vld [vmem:[%s3 + $0x58] sm:$0xf]
    %v274 = vld [vmem:[%s3 + $0x5c] sm:$0xf]
    %v275 = vld [vmem:[%s3 + $0x60] sm:$0xf]
    %v276 = vld [vmem:[%s3 + $0x64] sm:$0xf]
    %v277 = vld [vmem:[%s3 + $0x68] sm:$0xf]
    %v278 = vld [vmem:[%s3 + $0x6c] sm:$0xf]
    %v279 = vld [vmem:[%s3 + $0x70] sm:$0xf]
    %v280 = vld [vmem:[%s3 + $0x74] sm:$0xf]
    %v281 = vld [vmem:[%s3 + $0x78] sm:$0xf]
    %v282 = vld [vmem:[%s3 + $0x7c] sm:$0xf]
    %v283 = vld [vmem:[%s3 + $0x80] sm:$0xf]
    %v284 = vld [vmem:[%s3 + $0x84] sm:$0xf]
    %v285 = vld [vmem:[%s3 + $0x88] sm:$0xf]
    %v286 = vld [vmem:[%s3 + $0x8c] sm:$0xf]
    %v287 = vld [vmem:[%s3 + $0x90] sm:$0xf]
    %v288 = vld [vmem:[%s3 + $0x94] sm:$0xf]
    %v289 = vld [vmem:[%s3 + $0x98] sm:$0xf]
    %v290 = vld [vmem:[%s3 + $0x9c] sm:$0xf]
    %v291 = vld [vmem:[%s3 + $0xa0] sm:$0xf]
    %v292 = vld [vmem:[%s3 + $0xa4] sm:$0xf]
    %v293 = vld [vmem:[%s3 + $0xa8] sm:$0xf]
    %v294 = vld [vmem:[%s3 + $0xac] sm:$0xf]
    %v295 = vld [vmem:[%s3 + $0xb0] sm:$0xf]
    %v296 = vld [vmem:[%s3 + $0xb4] sm:$0xf]
    %v297 = vld [vmem:[%s3 + $0xb8] sm:$0xf]
    %v298 = vld [vmem:[%s3 + $0xbc] sm:$0xf]
    %v299 = vld [vmem:[%s3 + $0xc0] sm:$0xf]
    %v300 = vld [vmem:[%s3 + $0xc4] sm:$0xf]
    %v301 = vld [vmem:[%s3 + $0xc8] sm:$0xf]
    %v302 = vld [vmem:[%s3 + $0xcc] sm:$0xf]
    %v303 = vld [vmem:[%s3 + $0xd0] sm:$0xf]
    %v304 = vld [vmem:[%s3 + $0xd4] sm:$0xf]
    %v305 = vld [vmem:[%s3 + $0xd8] sm:$0xf]
    %v306 = vld [vmem:[%s3 + $0xdc] sm:$0xf]
    %v307 = vld [vmem:[%s3 + $0xe0] sm:$0xf]
    %v308 = vld [vmem:[%s3 + $0xe4] sm:$0xf]
    %v309 = vld [vmem:[%s3 + $0xe8] sm:$0xf]
    %v310 = vld [vmem:[%s3 + $0xec] sm:$0xf]
    %v311 = vld [vmem:[%s3 + $0xf0] sm:$0xf]
    %v312 = vld [vmem:[%s3 + $0xf4] sm:$0xf]
    %v313 = vld [vmem:[%s3 + $0xf8] sm:$0xf]
    %v314 = vld [vmem:[%s3 + $0xfc] sm:$0xf]
    %v315 = vld [vmem:[%s4] sm:$0x1]
    %v317 = vlaneseq
    %v318 = vshrl.u32 %v317, 7
    %v319 = vsub.s32 0, %v318
    %v320 = vrot.slane %v315, %v319
    %v386 = vunpack.c.l.b16 %v251
    %v387 = vunpack.c.l.b16 %v252
    %v388 = vunpack.c.l.b16 %v253
    %v389 = vunpack.c.l.b16 %v254
    %v390 = vunpack.c.l.b16 %v255
    %v391 = vunpack.c.l.b16 %v256
    %v392 = vunpack.c.l.b16 %v257
    %v393 = vunpack.c.l.b16 %v258
    %v394 = vunpack.c.l.b16 %v259
    %v395 = vunpack.c.l.b16 %v260
    %v396 = vunpack.c.l.b16 %v261
    %v397 = vunpack.c.l.b16 %v262
    %v398 = vunpack.c.l.b16 %v263
    %v399 = vunpack.c.l.b16 %v264
    %v400 = vunpack.c.l.b16 %v265
    %v401 = vunpack.c.l.b16 %v266
    %v402 = vunpack.c.l.b16 %v267
    %v403 = vunpack.c.l.b16 %v268
    %v404 = vunpack.c.l.b16 %v269
    %v405 = vunpack.c.l.b16 %v270
    %v406 = vunpack.c.l.b16 %v271
    %v407 = vunpack.c.l.b16 %v272
    %v408 = vunpack.c.l.b16 %v273
    %v409 = vunpack.c.l.b16 %v274
    %v410 = vunpack.c.l.b16 %v275
    %v411 = vunpack.c.l.b16 %v276
    %v412 = vunpack.c.l.b16 %v277
    %v413 = vunpack.c.l.b16 %v278
    %v414 = vunpack.c.l.b16 %v279
    %v415 = vunpack.c.l.b16 %v280
    %v416 = vunpack.c.l.b16 %v281
    %v417 = vunpack.c.l.b16 %v282
    %v418 = vunpack.c.l.b16 %v283
    %v419 = vunpack.c.l.b16 %v284
    %v420 = vunpack.c.l.b16 %v285
    %v421 = vunpack.c.l.b16 %v286
    %v422 = vunpack.c.l.b16 %v287
    %v423 = vunpack.c.l.b16 %v288
    %v424 = vunpack.c.l.b16 %v289
    %v425 = vunpack.c.l.b16 %v290
    %v426 = vunpack.c.l.b16 %v291
    %v427 = vunpack.c.l.b16 %v292
    %v428 = vunpack.c.l.b16 %v293
    %v429 = vunpack.c.l.b16 %v294
    %v430 = vunpack.c.l.b16 %v295
    %v431 = vunpack.c.l.b16 %v296
    %v432 = vunpack.c.l.b16 %v297
    %v433 = vunpack.c.l.b16 %v298
    %v434 = vunpack.c.l.b16 %v299
    %v435 = vunpack.c.l.b16 %v300
    %v436 = vunpack.c.l.b16 %v301
    %v437 = vunpack.c.l.b16 %v302
    %v438 = vunpack.c.l.b16 %v303
    %v439 = vunpack.c.l.b16 %v304
    %v440 = vunpack.c.l.b16 %v305
    %v441 = vunpack.c.l.b16 %v306
    %v442 = vunpack.c.l.b16 %v307
    %v443 = vunpack.c.l.b16 %v308
    %v444 = vunpack.c.l.b16 %v309
    %v445 = vunpack.c.l.b16 %v310
    %v446 = vunpack.c.l.b16 %v311
    %v447 = vunpack.c.l.b16 %v312
    %v448 = vunpack.c.l.b16 %v313
    %v449 = vunpack.c.l.b16 %v314
    %v450 = vpack.c.b16 %v387, %v386
    %v451 = vpack.c.b16 %v389, %v388
    %v452 = vpack.c.b16 %v391, %v390
    %v453 = vpack.c.b16 %v393, %v392
    %v454 = vpack.c.b16 %v395, %v394
    %v455 = vpack.c.b16 %v397, %v396
    %v456 = vpack.c.b16 %v399, %v398
    %v457 = vpack.c.b16 %v401, %v400
    %v458 = vpack.c.b16 %v403, %v402
    %v459 = vpack.c.b16 %v405, %v404
    %v460 = vpack.c.b16 %v407, %v406
    %v461 = vpack.c.b16 %v409, %v408
    %v462 = vpack.c.b16 %v411, %v410
    %v463 = vpack.c.b16 %v413, %v412
    %v464 = vpack.c.b16 %v415, %v414
    %v465 = vpack.c.b16 %v417, %v416
    %v466 = vpack.c.b16 %v419, %v418
    %v467 = vpack.c.b16 %v421, %v420
    %v468 = vpack.c.b16 %v423, %v422
    %v469 = vpack.c.b16 %v425, %v424
    %v470 = vpack.c.b16 %v427, %v426
    %v471 = vpack.c.b16 %v429, %v428
    %v472 = vpack.c.b16 %v431, %v430
    %v473 = vpack.c.b16 %v433, %v432
    %v474 = vpack.c.b16 %v435, %v434
    %v475 = vpack.c.b16 %v437, %v436
    %v476 = vpack.c.b16 %v439, %v438
    %v477 = vpack.c.b16 %v441, %v440
    %v478 = vpack.c.b16 %v443, %v442
    %v479 = vpack.c.b16 %v445, %v444
    %v480 = vpack.c.b16 %v447, %v446
    %v481 = vpack.c.b16 %v449, %v448
    %514 = vmatprep.subr.bf16.mxu0 0
    %515 = vmatpush1.bf16.msra.mxu0 %v450
    %516 = vmatprep.subr.bf16.mxu0 0
    %517 = vmatpush1.bf16.msra.mxu0 %v451
    %518 = vmatprep.subr.bf16.mxu0 0
    %519 = vmatpush1.bf16.msra.mxu0 %v452
    %520 = vmatprep.subr.bf16.mxu0 0
    %521 = vmatpush1.bf16.msra.mxu0 %v453
    %522 = vmatprep.subr.bf16.mxu0 0
    %523 = vmatpush1.bf16.msra.mxu0 %v454
    %524 = vmatprep.subr.bf16.mxu0 0
    %525 = vmatpush1.bf16.msra.mxu0 %v455
    %526 = vmatprep.subr.bf16.mxu0 0
    %527 = vmatpush1.bf16.msra.mxu0 %v456
    %528 = vmatprep.subr.bf16.mxu0 0
    %529 = vmatpush1.bf16.msra.mxu0 %v457
    %530 = vmatprep.subr.bf16.mxu0 0
    %531 = vmatpush1.bf16.msra.mxu0 %v458
    %532 = vmatprep.subr.bf16.mxu0 0
    %533 = vmatpush1.bf16.msra.mxu0 %v459
    %534 = vmatprep.subr.bf16.mxu0 0
    %535 = vmatpush1.bf16.msra.mxu0 %v460
    %536 = vmatprep.subr.bf16.mxu0 0
    %537 = vmatpush1.bf16.msra.mxu0 %v461
    %538 = vmatprep.subr.bf16.mxu0 0
    %539 = vmatpush1.bf16.msra.mxu0 %v462
    %540 = vmatprep.subr.bf16.mxu0 0
    %541 = vmatpush1.bf16.msra.mxu0 %v463
    %542 = vmatprep.subr.bf16.mxu0 0
    %543 = vmatpush1.bf16.msra.mxu0 %v464
    %544 = vmatprep.subr.bf16.mxu0 0
    %545 = vmatpush1.bf16.msra.mxu0 %v465
    %546 = vmatprep.mubr.bf16.mxu0 %v248
    %547 = vmatmul.mubr.bf16.gmra.mrb[0].mxu0 %v247
    %v548 = vpop.f32.mrb[0].mxu0
    %v549 = vadd.f32 %v320, %v548
    %v550 = vpop.f32.mrb[0].mxu0
    %v551 = vpop.f32.mrb[0].mxu0
    %v552 = vadd.f32 %v320, %v551
    %v553 = vpop.f32.mrb[0].mxu0
    %554 = vdwg.mxu0
    %555 = vmatprep.subr.bf16.mxu0 0
    %556 = vmatpush1.bf16.msra.mxu0 %v466
    %557 = vmatprep.subr.bf16.mxu0 0
    %558 = vmatpush1.bf16.msra.mxu0 %v467
    %559 = vmatprep.subr.bf16.mxu0 0
    %560 = vmatpush1.bf16.msra.mxu0 %v468
    %561 = vmatprep.subr.bf16.mxu0 0
    %562 = vmatpush1.bf16.msra.mxu0 %v469
    %563 = vmatprep.subr.bf16.mxu0 0
    %564 = vmatpush1.bf16.msra.mxu0 %v470
    %565 = vmatprep.subr.bf16.mxu0 0
    %566 = vmatpush1.bf16.msra.mxu0 %v471
    %567 = vmatprep.subr.bf16.mxu0 0
    %568 = vmatpush1.bf16.msra.mxu0 %v472
    %569 = vmatprep.subr.bf16.mxu0 0
    %570 = vmatpush1.bf16.msra.mxu0 %v473
    %571 = vmatprep.subr.bf16.mxu0 0
    %572 = vmatpush1.bf16.msra.mxu0 %v474
    %573 = vmatprep.subr.bf16.mxu0 0
    %574 = vmatpush1.bf16.msra.mxu0 %v475
    %575 = vmatprep.subr.bf16.mxu0 0
    %576 = vmatpush1.bf16.msra.mxu0 %v476
    %577 = vmatprep.subr.bf16.mxu0 0
    %578 = vmatpush1.bf16.msra.mxu0 %v477
    %579 = vmatprep.subr.bf16.mxu0 0
    %580 = vmatpush1.bf16.msra.mxu0 %v478
    %581 = vmatprep.subr.bf16.mxu0 0
    %582 = vmatpush1.bf16.msra.mxu0 %v479
    %583 = vmatprep.subr.bf16.mxu0 0
    %584 = vmatpush1.bf16.msra.mxu0 %v480
    %585 = vmatprep.subr.bf16.mxu0 0
    %586 = vmatpush1.bf16.msra.mxu0 %v481
    %587 = vmatprep.mubr.bf16.mxu0 %v250
    %588 = vmatmul.mubr.bf16.gmra.mrb[0].mxu0 %v249
    %v589 = vpop.f32.mrb[0].mxu0
    %v590 = vadd.f32 %v549, %v589
    %v591 = vpop.f32.mrb[0].mxu0
    %v592 = vpop.f32.mrb[0].mxu0
    %v593 = vadd.f32 %v552, %v592
    %v594 = vpop.f32.mrb[0].mxu0
    %595 = vdwg.mxu0
    %v596 = vadd.f32 %v28, %v590
    %v597 = vadd.f32 %v29, %v593
    %v598 = vsel %vm149, %v596, 0.0
    %599 = vadd.xlane.f32.xlu0 %v598
    %v600 = vpop.xlane.xlu0 %599
    %v601 = vsel %vm149, %v597, 0.0
    %602 = vadd.xlane.f32.xlu0 %v601
    %v603 = vpop.xlane.xlu0 %602
    %v604 = vmul.f32 %v596, %v596
    %v605 = vmul.f32 %v597, %v597
    %v606 = vsel %vm149, %v604, 0.0
    %607 = vadd.xlane.f32.xlu0 %v606
    %v608 = vpop.xlane.xlu0 %607
    %v609 = vsel %vm149, %v605, 0.0
    %610 = vadd.xlane.f32.xlu0 %v609
    %v611 = vpop.xlane.xlu0 %610
    %v612 = vmul.f32 %v600, 0.015625
    %v613 = vmul.f32 %v603, 0.015625
    %v614 = vmul.f32 %v608, 0.015625
    %v615 = vmul.f32 %v611, 0.015625
    %v616 = vmul.f32 %v612, %v612
    %v617 = vmul.f32 %v613, %v613
    %v618 = vsub.f32 %v614, %v616
    %v619 = vsub.f32 %v615, %v617
    %v620 = vsub.f32 %v596, %v612
    %v621 = vsub.f32 %v597, %v613
    %v622 = vadd.f32 %v618, 1e-05
    %v623 = vadd.f32 %v619, 1e-05
    %v624 = vrsqrt.pop %v622
    %v625 = vrsqrt.pop %v623
    %v626 = vmul.f32 %v620, %v624
    %v627 = vmul.f32 %v621, %v625
    %v628 = vld [vmem:[%s5] sm:$0x1]
    %v630 = vlaneseq
    %v631 = vshrl.u32 %v630, 7
    %v632 = vsub.s32 0, %v631
    %v633 = vrot.slane %v628, %v632
    %v635 = vmul.f32 %v626, %v633
    %v636 = vmul.f32 %v627, %v633
    %v637 = vld [vmem:[%s6] sm:$0x1]
    %v639 = vlaneseq
    %v640 = vshrl.u32 %v639, 7
    %v641 = vsub.s32 0, %v640
    %v642 = vrot.slane %v637, %v641
    %v644 = vadd.f32 %v635, %v642
    %v645 = vadd.f32 %v636, %v642
    %646 = vst.msk [vmem:[#allocation2] sm:$0xff] %vm149, %v644
    %647 = vst.msk [vmem:[#allocation2 + $0x8] sm:$0xff] %vm149, %v645
    // Predicated region
    $region30: #{positional_wise_ffn.1} parent=1 // pred_check
      _
    $region31: #{positional_wise_ffn.1} parent=1 // pred_check_branch
      %649 = sbr.rel (0) target = $region33
    $region32: #{positional_wise_ffn.1} parent=1 // pred_region
      %s651 = ssub.s32 256, 256
      %652 = vsyncadd [#allocation3], %s651
      %s653 = sshll.u32 [#allocation2], 4
      %s654 = int_to_ptr.vmem [resolvable:$true] %s653
      %659 = dma.vmem_to_hbm [thread:$0]  %s654, 256, %s7, [#allocation3], 128, 128, 8
    $region33: #{positional_wise_ffn.1} parent=1 // pred_fallthru
      _
    // Predicated region
    $region34: #{positional_wise_ffn.1} parent=1 // pred_check
      _
    $region35: #{positional_wise_ffn.1} parent=1 // pred_check_branch
      %661 = sbr.rel (0) target = $region37
    $region36: #{positional_wise_ffn.1} parent=1 // pred_region
      %662 = dma.done [#allocation3], 256
    $region37: #{positional_wise_ffn.1} parent=1 // pred_fallthru
      _
    %663 = vsyncpa [#allocation3], 1

</llo_original>
